<compile_context>
chip_gen: v7x
topology: tpu7x:2x2x1
jax: 0.10.0
libtpu: 0.0.40
codegen_flags: <defaults>
</compile_context>

<pallas_src>
import jax
import jax.numpy as jnp
from jax.experimental import pallas as pl
from jax.experimental.pallas import tpu as pltpu


def _quad_coupling_kernel(x_ref, ctx_ref, wx_ref, wc_ref, b_ref, z_ref, ladj_ref):
    """One grid step = `bt` batch elements.

    x_ref   : (bt, C, HW)      full input channels (NCHW flattened, HW lane-dense)
    ctx_ref : (bt, Cctx, HW)   context channels
    wx_ref  : (2*Cpad, C)      fused x-part weights   [log_s head | pad | t head | pad]
    wc_ref  : (2*Cpad, Cctx)   fused context-part weights
    b_ref   : (2*Cpad, 1)      fused biases
    z_ref   : (bt, C, HW)      full output (pass-through channels included)
    ladj_ref: (bt, 1)  SMEM    per-batch-element sum of log_s
    """
    bt, c, _ = z_ref.shape
    c_pad = wx_ref.shape[0] // 2
    wx = wx_ref[...]
    wc = wc_ref[...]
    bias = b_ref[...]
    for i in range(bt):
        xb = x_ref[i]                                          # (C, HW)
        cb = ctx_ref[i]                                        # (Cctx, HW)
        st = (jnp.dot(wx, xb, preferred_element_type=jnp.float32)
              + jnp.dot(wc, cb, preferred_element_type=jnp.float32)
              + bias)                                          # (2*Cpad, HW)
        log_s = st[:c]                                         # aligned prefix view
        t = st[c_pad:c_pad + c]                                # 8-aligned start
        z_ref[i] = (xb + t) * jnp.exp(log_s)
        ladj_ref[i, 0] = jnp.sum(log_s)                        # pass-through rows add 0


def _fuse_params(weights, biases, chan_coup, c_ctx):
    """Pack the 3 couplings' 1x1-conv params into fused (log_s | t) matrices.

    Row layout (Cpad = round_up(4*chan_coup, 8)):
      rows [0, C)           : log_s head, aligned with z channel index
      rows [Cpad, Cpad + C) : t head,     aligned with z channel index
    Pass-through channels (first chan_coup rows of each head) stay zero, and
    coupling `it` only sees x[:, :it*chan_coup] plus context (other x columns
    are zero), matching the reference module.
    """
    c = 4 * chan_coup
    c_pad = ((c + 7) // 8) * 8
    w_x = jnp.zeros((2 * c_pad, c), jnp.float32)
    w_c = jnp.zeros((2 * c_pad, c_ctx), jnp.float32)
    b = jnp.zeros((2 * c_pad, 1), jnp.float32)
    for it in range(1, 4):
        w = weights[it - 1].astype(jnp.float32)                 # (2*Cc, it*Cc + Cctx)
        bi = biases[it - 1].astype(jnp.float32)                 # (2*Cc,)
        rs = slice(it * chan_coup, (it + 1) * chan_coup)                      # log_s rows
        rt = slice(c_pad + it * chan_coup, c_pad + (it + 1) * chan_coup)      # t rows
        w_x = w_x.at[rs, : it * chan_coup].set(w[:chan_coup, : it * chan_coup])
        w_x = w_x.at[rt, : it * chan_coup].set(w[chan_coup:, : it * chan_coup])
        w_c = w_c.at[rs, :].set(w[:chan_coup, it * chan_coup:])
        w_c = w_c.at[rt, :].set(w[chan_coup:, it * chan_coup:])
        b = b.at[rs, 0].set(bi[:chan_coup])
        b = b.at[rt, 0].set(bi[chan_coup:])
    return w_x, w_c, b


def quad_coupling_forward(x, context, weights, biases, *, batch_block=None):
    """x: (B, C, H, W) NCHW, context: (B, Cctx, H, W). Returns (z, ladj)."""
    B, C, H, W = x.shape
    assert C % 4 == 0, "Must contain 4n channels"
    chan_coup = C // 4
    c_ctx = context.shape[1]
    HW = H * W
    c_pad = ((C + 7) // 8) * 8

    # Free reshapes only -- no concat / transpose passes over HBM.
    x_r = x.reshape(B, C, HW).astype(jnp.float32)
    ctx_r = context.reshape(B, c_ctx, HW).astype(jnp.float32)
    w_x, w_c, b = _fuse_params(weights, biases, chan_coup, c_ctx)

    if batch_block is None:
        # Block as many batch elements per grid step as a modest VMEM budget
        # allows (blocks are double-buffered; keep well under the 64 MiB v7x cap).
        per_elem = (2 * C + c_ctx) * HW * 4            # x + z + ctx bytes per element
        bt = max(1, min(B, (4 * 1024 * 1024) // max(per_elem, 1)))
        while B % bt:
            bt -= 1
    else:
        bt = batch_block
    grid = (B // bt,)

    z, ladj = pl.pallas_call(
        _quad_coupling_kernel,
        out_shape=(
            jax.ShapeDtypeStruct((B, C, HW), jnp.float32),
            jax.ShapeDtypeStruct((B, 1), jnp.float32),
        ),
        grid=grid,
        in_specs=[
            pl.BlockSpec((bt, C, HW), lambda i: (i, 0, 0)),
            pl.BlockSpec((bt, c_ctx, HW), lambda i: (i, 0, 0)),
            pl.BlockSpec((2 * c_pad, C), lambda i: (0, 0)),
            pl.BlockSpec((2 * c_pad, c_ctx), lambda i: (0, 0)),
            pl.BlockSpec((2 * c_pad, 1), lambda i: (0, 0)),
        ],
        out_specs=[
            pl.BlockSpec((bt, C, HW), lambda i: (i, 0, 0)),
            pl.BlockSpec((bt, 1), lambda i: (i, 0),
                         memory_space=pltpu.MemorySpace.SMEM),
        ],
        compiler_params=pltpu.CompilerParams(
            dimension_semantics=("parallel",),
            vmem_limit_bytes=32 * 1024 * 1024,
        ),
    )(x_r, ctx_r, w_x, w_c, b)

    return z.reshape(B, C, H, W), ladj[:, 0]


def quad_coupling_reference(x, context, weights, biases):
    """Pure-JAX reference mirroring the PyTorch module semantics."""
    B, C, H, W = x.shape
    chan_coup = C // 4
    z = x[:, :chan_coup]
    ladj = jnp.zeros((B,), jnp.float32)
    for it in range(1, 4):
        new_x = x[:, it * chan_coup:(it + 1) * chan_coup]
        emb_x = jnp.concatenate([x[:, : it * chan_coup], context], axis=1)
        st = jnp.einsum("oc,bchw->bohw", weights[it - 1], emb_x) \
            + biases[it - 1][None, :, None, None]
        log_s, t = st[:, :chan_coup], st[:, chan_coup:]
        z_i = (new_x + t) * jnp.exp(log_s)
        z = jnp.concatenate([z, z_i], axis=1)
        ladj = ladj + jnp.sum(log_s, axis=(1, 2, 3))
    return z, ladj


if __name__ == "__main__":
    B, C, H, W = 2, 8, 16, 16          # chan_coup = 2
    C_CTX = 4
    chan_coup = C // 4

    key = jax.random.PRNGKey(0)
    kx, kc, *kw = jax.random.split(key, 2 + 6)
    x = jax.random.normal(kx, (B, C, H, W), jnp.float32)
    context = jax.random.normal(kc, (B, C_CTX, H, W), jnp.float32)

    # Deterministic 1x1-conv st_net params: out = 2*chan_coup, in = it*chan_coup + C_CTX
    weights, biases = [], []
    for it in range(1, 4):
        cin = it * chan_coup + C_CTX
        w = 0.1 * jax.random.normal(kw[2 * (it - 1)], (2 * chan_coup, cin), jnp.float32)
        b = 0.1 * jax.random.normal(kw[2 * (it - 1) + 1], (2 * chan_coup,), jnp.float32)
        weights.append(w)
        biases.append(b)

    z, ladj = quad_coupling_forward(x, context, weights, biases)
    jax.block_until_ready((z, ladj))

    z_ref, ladj_ref = quad_coupling_reference(x, context, weights, biases)
    assert z.shape == (B, C, H, W) and ladj.shape == (B,)
    assert jnp.allclose(z, z_ref, rtol=1e-5, atol=1e-5)
    assert jnp.allclose(ladj, ladj_ref, rtol=1e-4, atol=1e-4)
    print("KERNEL_OK")
</pallas_src>

<mosaic_0001>
module attributes {stable_mosaic.version = 11 : i64} {
  func.func @_quad_coupling_kernel(%arg0: i32, %arg1: memref<2x8x256xf32, #tpu.memory_space<vmem>>, %arg2: memref<2x4x256xf32, #tpu.memory_space<vmem>>, %arg3: memref<16x8xf32, #tpu.memory_space<vmem>>, %arg4: memref<16x4xf32, #tpu.memory_space<vmem>>, %arg5: memref<16x1xf32, #tpu.memory_space<vmem>>, %arg6: memref<2x8x256xf32, #tpu.memory_space<vmem>>, %arg7: memref<2x1xf32, #tpu.memory_space<smem>>) attributes {dimension_semantics = [#tpu.dimension_semantics<parallel>], iteration_bounds = array<i64: 1>, scalar_prefetch = 0 : i64, scratch_operands = 0 : i64, tpu.core_type = #tpu.core_type<tc>, window_params = [{transform_indices = @transform_0, window_bounds = array<i64: 2, 8, 256>}, {transform_indices = @transform_1, window_bounds = array<i64: 2, 4, 256>}, {pipeline_mode = #tpu.pipeline_mode<synchronous>, transform_indices = @transform_2, window_bounds = array<i64: 16, 8>}, {pipeline_mode = #tpu.pipeline_mode<synchronous>, transform_indices = @transform_3, window_bounds = array<i64: 16, 4>}, {pipeline_mode = #tpu.pipeline_mode<synchronous>, transform_indices = @transform_4, window_bounds = array<i64: 16, 1>}, {transform_indices = @transform_5, window_bounds = array<i64: 2, 8, 256>}, {transform_indices = @transform_6, window_bounds = array<i64: 2, 1>}]} {
    %c0 = arith.constant 0 : index
    %c0_0 = arith.constant 0 : index
    %0 = vector.load %arg3[%c0, %c0_0] : memref<16x8xf32, #tpu.memory_space<vmem>>, vector<16x8xf32>
    %c0_1 = arith.constant 0 : index
    %c0_2 = arith.constant 0 : index
    %1 = vector.load %arg4[%c0_1, %c0_2] : memref<16x4xf32, #tpu.memory_space<vmem>>, vector<16x4xf32>
    %c0_3 = arith.constant 0 : index
    %c0_4 = arith.constant 0 : index
    %2 = vector.load %arg5[%c0_3, %c0_4] : memref<16x1xf32, #tpu.memory_space<vmem>>, vector<16x1xf32>
    %c0_5 = arith.constant 0 : index
    %c0_6 = arith.constant 0 : index
    %c0_7 = arith.constant 0 : index
    %3 = vector.load %arg1[%c0_5, %c0_6, %c0_7] : memref<2x8x256xf32, #tpu.memory_space<vmem>>, vector<1x8x256xf32>
    %4 = vector.shape_cast %3 : vector<1x8x256xf32> to vector<8x256xf32>
    %c0_8 = arith.constant 0 : index
    %c0_9 = arith.constant 0 : index
    %c0_10 = arith.constant 0 : index
    %5 = vector.load %arg2[%c0_8, %c0_9, %c0_10] : memref<2x4x256xf32, #tpu.memory_space<vmem>>, vector<1x4x256xf32>
    %6 = vector.shape_cast %5 : vector<1x4x256xf32> to vector<4x256xf32>
    %cst = arith.constant dense<0.000000e+00> : vector<16x256xf32>
    %7 = tpu.matmul %0, %4, %cst {dimension_numbers = #tpu.dot_dimension_numbers<[1], [0], [0], [1], [0, 0, 1, 1], [], []>} : vector<16x8xf32>, vector<8x256xf32>, vector<16x256xf32> -> vector<16x256xf32>
    %cst_11 = arith.constant dense<0.000000e+00> : vector<16x256xf32>
    %8 = tpu.matmul %1, %6, %cst_11 {dimension_numbers = #tpu.dot_dimension_numbers<[1], [0], [0], [1], [0, 0, 1, 1], [], []>} : vector<16x4xf32>, vector<4x256xf32>, vector<16x256xf32> -> vector<16x256xf32>
    %9 = arith.addf %7, %8 : vector<16x256xf32>
    %10 = vector.broadcast %2 : vector<16x1xf32> to vector<16x256xf32>
    %11 = arith.addf %9, %10 : vector<16x256xf32>
    %12 = vector.extract_strided_slice %11 {offsets = [0, 0], sizes = [8, 256], strides = [1, 1]} : vector<16x256xf32> to vector<8x256xf32>
    %13 = vector.extract_strided_slice %11 {offsets = [8, 0], sizes = [8, 256], strides = [1, 1]} : vector<16x256xf32> to vector<8x256xf32>
    %14 = arith.addf %4, %13 : vector<8x256xf32>
    %15 = math.exp %12 : vector<8x256xf32>
    %16 = arith.mulf %14, %15 : vector<8x256xf32>
    %c0_12 = arith.constant 0 : index
    %c0_13 = arith.constant 0 : index
    %c0_14 = arith.constant 0 : index
    %17 = vector.load %arg6[%c0_12, %c0_13, %c0_14] : memref<2x8x256xf32, #tpu.memory_space<vmem>>, vector<1x8x256xf32>
    %18 = vector.shape_cast %17 : vector<1x8x256xf32> to vector<8x256xf32>
    %19 = vector.shape_cast %16 : vector<8x256xf32> to vector<1x8x256xf32>
    tpu.vector_store %arg6[%c0_12, %c0_13, %c0_14], %19 {strides = array<i32>} : memref<2x8x256xf32, #tpu.memory_space<vmem>>, vector<1x8x256xf32>,
    %20 = vector.shape_cast %12 : vector<8x256xf32> to vector<1x8x256xf32>
    %cst_15 = arith.constant dense<0.000000e+00> : vector<1xf32>
    %21 = vector.multi_reduction <add>, %20, %cst_15 [1, 2] : vector<1x8x256xf32> to vector<1xf32>
    %22 = vector.shape_cast %21 : vector<1xf32> to vector<1x1x1xf32>
    %23 = vector.extract %22[0, 0, 0] : f32 from vector<1x1x1xf32>
    %c0_16 = arith.constant 0 : index
    %c0_17 = arith.constant 0 : index
    %24 = memref.load %arg7[%c0_16, %c0_17] : memref<2x1xf32, #tpu.memory_space<smem>>
    memref.store %23, %arg7[%c0_16, %c0_17] : memref<2x1xf32, #tpu.memory_space<smem>>
    %c1 = arith.constant 1 : index
    %c0_18 = arith.constant 0 : index
    %c0_19 = arith.constant 0 : index
    %25 = vector.load %arg1[%c1, %c0_18, %c0_19] : memref<2x8x256xf32, #tpu.memory_space<vmem>>, vector<1x8x256xf32>
    %26 = vector.shape_cast %25 : vector<1x8x256xf32> to vector<8x256xf32>
    %c1_20 = arith.constant 1 : index
    %c0_21 = arith.constant 0 : index
    %c0_22 = arith.constant 0 : index
    %27 = vector.load %arg2[%c1_20, %c0_21, %c0_22] : memref<2x4x256xf32, #tpu.memory_space<vmem>>, vector<1x4x256xf32>
    %28 = vector.shape_cast %27 : vector<1x4x256xf32> to vector<4x256xf32>
    %cst_23 = arith.constant dense<0.000000e+00> : vector<16x256xf32>
    %29 = tpu.matmul %0, %26, %cst_23 {dimension_numbers = #tpu.dot_dimension_numbers<[1], [0], [0], [1], [0, 0, 1, 1], [], []>} : vector<16x8xf32>, vector<8x256xf32>, vector<16x256xf32> -> vector<16x256xf32>
    %cst_24 = arith.constant dense<0.000000e+00> : vector<16x256xf32>
    %30 = tpu.matmul %1, %28, %cst_24 {dimension_numbers = #tpu.dot_dimension_numbers<[1], [0], [0], [1], [0, 0, 1, 1], [], []>} : vector<16x4xf32>, vector<4x256xf32>, vector<16x256xf32> -> vector<16x256xf32>
    %31 = arith.addf %29, %30 : vector<16x256xf32>
    %32 = vector.broadcast %2 : vector<16x1xf32> to vector<16x256xf32>
    %33 = arith.addf %31, %32 : vector<16x256xf32>
    %34 = vector.extract_strided_slice %33 {offsets = [0, 0], sizes = [8, 256], strides = [1, 1]} : vector<16x256xf32> to vector<8x256xf32>
    %35 = vector.extract_strided_slice %33 {offsets = [8, 0], sizes = [8, 256], strides = [1, 1]} : vector<16x256xf32> to vector<8x256xf32>
    %36 = arith.addf %26, %35 : vector<8x256xf32>
    %37 = math.exp %34 : vector<8x256xf32>
    %38 = arith.mulf %36, %37 : vector<8x256xf32>
    %c1_25 = arith.constant 1 : index
    %c0_26 = arith.constant 0 : index
    %c0_27 = arith.constant 0 : index
    %39 = vector.load %arg6[%c1_25, %c0_26, %c0_27] : memref<2x8x256xf32, #tpu.memory_space<vmem>>, vector<1x8x256xf32>
    %40 = vector.shape_cast %39 : vector<1x8x256xf32> to vector<8x256xf32>
    %41 = vector.shape_cast %38 : vector<8x256xf32> to vector<1x8x256xf32>
    tpu.vector_store %arg6[%c1_25, %c0_26, %c0_27], %41 {strides = array<i32>} : memref<2x8x256xf32, #tpu.memory_space<vmem>>, vector<1x8x256xf32>,
    %42 = vector.shape_cast %34 : vector<8x256xf32> to vector<1x8x256xf32>
    %cst_28 = arith.constant dense<0.000000e+00> : vector<1xf32>
    %43 = vector.multi_reduction <add>, %42, %cst_28 [1, 2] : vector<1x8x256xf32> to vector<1xf32>
    %44 = vector.shape_cast %43 : vector<1xf32> to vector<1x1x1xf32>
    %45 = vector.extract %44[0, 0, 0] : f32 from vector<1x1x1xf32>
    %c1_29 = arith.constant 1 : index
    %c0_30 = arith.constant 0 : index
    %46 = memref.load %arg7[%c1_29, %c0_30] : memref<2x1xf32, #tpu.memory_space<smem>>
    memref.store %45, %arg7[%c1_29, %c0_30] : memref<2x1xf32, #tpu.memory_space<smem>>
    return
  }
  func.func @transform_0(%arg0: i32) -> (i32, i32, i32) {
    %c0_i32 = arith.constant 0 : i32
    %c0_i32_0 = arith.constant 0 : i32
    %c0_i32_1 = arith.constant 0 : i32
    return %arg0, %c0_i32, %c0_i32_0 : i32, i32, i32
  }
  func.func @transform_1(%arg0: i32) -> (i32, i32, i32) {
    %c0_i32 = arith.constant 0 : i32
    %c0_i32_0 = arith.constant 0 : i32
    %c0_i32_1 = arith.constant 0 : i32
    return %arg0, %c0_i32, %c0_i32_0 : i32, i32, i32
  }
  func.func @transform_2(%arg0: i32) -> (i32, i32) {
    %c0_i32 = arith.constant 0 : i32
    %c0_i32_0 = arith.constant 0 : i32
    %c0_i32_1 = arith.constant 0 : i32
    return %c0_i32, %c0_i32_0 : i32, i32
  }
  func.func @transform_3(%arg0: i32) -> (i32, i32) {
    %c0_i32 = arith.constant 0 : i32
    %c0_i32_0 = arith.constant 0 : i32
    %c0_i32_1 = arith.constant 0 : i32
    return %c0_i32, %c0_i32_0 : i32, i32
  }
  func.func @transform_4(%arg0: i32) -> (i32, i32) {
    %c0_i32 = arith.constant 0 : i32
    %c0_i32_0 = arith.constant 0 : i32
    %c0_i32_1 = arith.constant 0 : i32
    return %c0_i32, %c0_i32_0 : i32, i32
  }
  func.func @transform_5(%arg0: i32) -> (i32, i32, i32) {
    %c0_i32 = arith.constant 0 : i32
    %c0_i32_0 = arith.constant 0 : i32
    %c0_i32_1 = arith.constant 0 : i32
    return %arg0, %c0_i32, %c0_i32_0 : i32, i32, i32
  }
  func.func @transform_6(%arg0: i32) -> (i32, i32) {
    %c0_i32 = arith.constant 0 : i32
    %c0_i32_0 = arith.constant 0 : i32
    return %arg0, %c0_i32 : i32, i32
  }
}

</mosaic_0001>

<llo_original>
// kernel: tpu_custom_call.1
$region0: #{tpu_custom_call.1}
  #allocation0 [shape = 'u32[]', space=smem, size = 0x4, offset = 0x4, fixed_abs, tag = 'smem constant byte address 0x4 - core index']
  #allocation1 [shape = 'u32[144,128]{1,0:T(1,128)}', space=vmem, size = 0x12000, scoped, tag = 'internal scratch']
  %s0 = inlined_call_operand.vmem [shape: f32[2,8,256], index: 0, kind: input, shape index: {}]
  %s1 = inlined_call_operand.vmem [shape: f32[2,4,256], index: 1, kind: input, shape index: {}]
  %s2 = inlined_call_operand.vmem [shape: f32[16,8], index: 2, kind: input, shape index: {}]
  %s3 = inlined_call_operand.vmem [shape: f32[16,4], index: 3, kind: input, shape index: {}]
  %s4 = inlined_call_operand.vmem [shape: f32[16,1], index: 4, kind: input, shape index: {}]
  %s5 = inlined_call_operand.hbm [shape: f32[2,8,256], index: 5, kind: output, shape index: {0}]
  %s6 = inlined_call_operand.vmem [shape: f32[2,1], index: 6, kind: output, shape index: {1}]
  %7 = xla_tuple %s5, %s6
  %s8 = sld [smem:[#allocation0]]
  $region38: #{tpu_custom_call.1} parent=0
    _
  %s10 = ssub.s32 1, %s8
  %s11 = scalar_select 0, %s10, %s8
  $region1: #{tpu_custom_call.1} parent=0
    #allocation2 [shape = 'u8[16384]{0}', space=vmem, size = 0x4000, scoped, tag = 'output window, operand 0, single buffered']
    #allocation3 [shape = 's32[1]{0}', space=sflag, size = 0x4, scoped, tag = 'scoped memory for tpu_custom_call.1']
    #allocation4 [shape = 's32[1]{0}', space=sflag, size = 0x4, scoped, tag = 'scoped memory for tpu_custom_call.1']
    #allocation5 [shape = 'u8[1024]{0}', space=smem, size = 0x400, scoped, tag = 'output window, operand 1, single buffered']
    %12 = vsyncpa [#allocation3], 0
    %13 = vsyncpa [#allocation4], 0
    // Predicated region
    $region2: #{tpu_custom_call.1} parent=1 // pred_check
      _
    $region3: #{tpu_custom_call.1} parent=1 // pred_check_branch
      %15 = sbr.rel (0) target = $region5
    $region4: #{tpu_custom_call.1} parent=1 // pred_region
      _
    $region5: #{tpu_custom_call.1} parent=1 // pred_fallthru
      _
    // Predicated region
    $region6: #{tpu_custom_call.1} parent=1 // pred_check
      _
    $region7: #{tpu_custom_call.1} parent=1 // pred_check_branch
      %17 = sbr.rel (0) target = $region9
    $region8: #{tpu_custom_call.1} parent=1 // pred_region
      _
    $region9: #{tpu_custom_call.1} parent=1 // pred_fallthru
      _
    // Predicated region
    $region10: #{tpu_custom_call.1} parent=1 // pred_check
      _
    $region11: #{tpu_custom_call.1} parent=1 // pred_check_branch
      %19 = sbr.rel (0) target = $region13
    $region12: #{tpu_custom_call.1} parent=1 // pred_region
      _
    $region13: #{tpu_custom_call.1} parent=1 // pred_fallthru
      _
    // Predicated region
    $region14: #{tpu_custom_call.1} parent=1 // pred_check
      _
    $region15: #{tpu_custom_call.1} parent=1 // pred_check_branch
      %21 = sbr.rel (0) target = $region17
    $region16: #{tpu_custom_call.1} parent=1 // pred_region
      _
    $region17: #{tpu_custom_call.1} parent=1 // pred_fallthru
      _
    // Predicated region
    $region18: #{tpu_custom_call.1} parent=1 // pred_check
      _
    $region19: #{tpu_custom_call.1} parent=1 // pred_check_branch
      %23 = sbr.rel (0) target = $region21
    $region20: #{tpu_custom_call.1} parent=1 // pred_region
      _
    $region21: #{tpu_custom_call.1} parent=1 // pred_fallthru
      _
    %v24 = vld [vmem:[%s2] sm:$0xff]
    %v25 = vld [vmem:[%s2 + $0x8] sm:$0xff]
    %v26 = vld [vmem:[%s3] sm:$0xff]
    %v27 = vld [vmem:[%s3 + $0x8] sm:$0xff]
    %v28 = vld [vmem:[%s4] sm:$0xff]
    %v29 = vld [vmem:[%s4 + $0x8] sm:$0xff]
    %v30 = vld [vmem:[%s0] sm:$0xff]
    %v31 = vld [vmem:[%s0 + $0x8] sm:$0xff]
    %v32 = vld [vmem:[%s1] sm:$0xff]
    %v34 = vcombine.high %v32, %v32
    %vm35 = vcmask 31744
    %v37 = vsel %vm35, %v26, 0
    %v40 = vsel %vm35, %v27, 0
    %vm42 = vcmask 1043456
    %v43 = vsel %vm42, %v32, 0
    %v45 = vsel %vm42, %v34, 0
    %47 = vmatprep.subr.mxu0 %v45
    %48 = vmatpush1.msra.mxu0 %v43
    %49 = vmatprep.subr.mxu0 0.0
    %50 = vmatpush1.msra.mxu0 0.0
    %51 = vmatprep.subr.mxu0 0.0
    %52 = vmatpush1.msra.mxu0 0.0
    %53 = vmatprep.subr.mxu0 0.0
    %54 = vmatpush1.msra.mxu0 0.0
    %55 = vmatprep.subr.mxu0 0.0
    %56 = vmatpush1.msra.mxu0 0.0
    %57 = vmatprep.subr.mxu0 0.0
    %58 = vmatpush1.msra.mxu0 0.0
    %59 = vmatprep.subr.mxu0 0.0
    %60 = vmatpush1.msra.mxu0 0.0
    %61 = vmatprep.subr.mxu0 0.0
    %62 = vmatpush1.msra.mxu0 0.0
    %63 = vmatprep.subr.mxu0 0.0
    %64 = vmatpush1.msra.mxu0 0.0
    %65 = vmatprep.subr.mxu0 0.0
    %66 = vmatpush1.msra.mxu0 0.0
    %67 = vmatprep.subr.mxu0 0.0
    %68 = vmatpush1.msra.mxu0 0.0
    %69 = vmatprep.subr.mxu0 0.0
    %70 = vmatpush1.msra.mxu0 0.0
    %71 = vmatprep.subr.mxu0 0.0
    %72 = vmatpush1.msra.mxu0 0.0
    %73 = vmatprep.subr.mxu0 0.0
    %74 = vmatpush1.msra.mxu0 0.0
    %75 = vmatprep.subr.mxu0 0.0
    %76 = vmatpush1.msra.mxu0 0.0
    %77 = vmatprep.subr.mxu0 0.0
    %78 = vmatpush1.msra.mxu0 0.0
    %79 = vmatprep.subr.mxu0 0.0
    %80 = vmatpush1.msra.mxu0 0.0
    %81 = vmatprep.subr.mxu0 0.0
    %82 = vmatpush1.msra.mxu0 0.0
    %83 = vmatprep.subr.mxu0 0.0
    %84 = vmatpush1.msra.mxu0 0.0
    %85 = vmatprep.subr.mxu0 0.0
    %86 = vmatpush1.msra.mxu0 0.0
    %87 = vmatprep.subr.mxu0 0.0
    %88 = vmatpush1.msra.mxu0 0.0
    %89 = vmatprep.subr.mxu0 0.0
    %90 = vmatpush1.msra.mxu0 0.0
    %91 = vmatprep.subr.mxu0 0.0
    %92 = vmatpush1.msra.mxu0 0.0
    %93 = vmatprep.subr.mxu0 0.0
    %94 = vmatpush1.msra.mxu0 0.0
    %95 = vmatprep.subr.mxu0 0.0
    %96 = vmatpush1.msra.mxu0 0.0
    %97 = vmatprep.subr.mxu0 0.0
    %98 = vmatpush1.msra.mxu0 0.0
    %99 = vmatprep.subr.mxu0 0.0
    %100 = vmatpush1.msra.mxu0 0.0
    %101 = vmatprep.subr.mxu0 0.0
    %102 = vmatpush1.msra.mxu0 0.0
    %103 = vmatprep.subr.mxu0 0.0
    %104 = vmatpush1.msra.mxu0 0.0
    %105 = vmatprep.subr.mxu0 0.0
    %106 = vmatpush1.msra.mxu0 0.0
    %107 = vmatprep.subr.mxu0 0.0
    %108 = vmatpush1.msra.mxu0 0.0
    %109 = vmatprep.subr.mxu0 0.0
    %110 = vmatpush1.msra.mxu0 0.0
    %111 = vmatprep.mubr.f32.mxu0 0.0
    %112 = vmatmul.mubr.f32.gmra.mrb[0].mxu0 %v37
    %v113 = vpop.f32.mrb[0].mxu0
    %v114 = vadd.f32 0.0, %v113
    %v115 = vpop.f32.mrb[0].mxu0
    %v116 = vadd.f32 0.0, %v115
    %117 = vmatprep.mubr.f32.mxu0 0.0
    %118 = vmatmul.mubr.f32.gmra.mrb[0].mxu0 %v40
    %v119 = vpop.f32.mrb[0].mxu0
    %v120 = vadd.f32 0.0, %v119
    %v121 = vpop.f32.mrb[0].mxu0
    %v122 = vadd.f32 0.0, %v121
    %123 = vdwg.mxu0
    %vm124 = vcmask 64512
    %v126 = vsel %vm124, %v24, 0
    %v129 = vsel %vm124, %v25, 0
    %131 = vmatprep.subr.mxu0 %v31
    %132 = vmatpush1.msra.mxu0 %v30
    %133 = vmatprep.subr.mxu0 0.0
    %134 = vmatpush1.msra.mxu0 0.0
    %135 = vmatprep.subr.mxu0 0.0
    %136 = vmatpush1.msra.mxu0 0.0
    %137 = vmatprep.subr.mxu0 0.0
    %138 = vmatpush1.msra.mxu0 0.0
    %139 = vmatprep.subr.mxu0 0.0
    %140 = vmatpush1.msra.mxu0 0.0
    %141 = vmatprep.subr.mxu0 0.0
    %142 = vmatpush1.msra.mxu0 0.0
    %143 = vmatprep.subr.mxu0 0.0
    %144 = vmatpush1.msra.mxu0 0.0
    %145 = vmatprep.subr.mxu0 0.0
    %146 = vmatpush1.msra.mxu0 0.0
    %147 = vmatprep.subr.mxu0 0.0
    %148 = vmatpush1.msra.mxu0 0.0
    %149 = vmatprep.subr.mxu0 0.0
    %150 = vmatpush1.msra.mxu0 0.0
    %151 = vmatprep.subr.mxu0 0.0
    %152 = vmatpush1.msra.mxu0 0.0
    %153 = vmatprep.subr.mxu0 0.0
    %154 = vmatpush1.msra.mxu0 0.0
    %155 = vmatprep.subr.mxu0 0.0
    %156 = vmatpush1.msra.mxu0 0.0
    %157 = vmatprep.subr.mxu0 0.0
    %158 = vmatpush1.msra.mxu0 0.0
    %159 = vmatprep.subr.mxu0 0.0
    %160 = vmatpush1.msra.mxu0 0.0
    %161 = vmatprep.subr.mxu0 0.0
    %162 = vmatpush1.msra.mxu0 0.0
    %163 = vmatprep.subr.mxu0 0.0
    %164 = vmatpush1.msra.mxu0 0.0
    %165 = vmatprep.subr.mxu0 0.0
    %166 = vmatpush1.msra.mxu0 0.0
    %167 = vmatprep.subr.mxu0 0.0
    %168 = vmatpush1.msra.mxu0 0.0
    %169 = vmatprep.subr.mxu0 0.0
    %170 = vmatpush1.msra.mxu0 0.0
    %171 = vmatprep.subr.mxu0 0.0
    %172 = vmatpush1.msra.mxu0 0.0
    %173 = vmatprep.subr.mxu0 0.0
    %174 = vmatpush1.msra.mxu0 0.0
    %175 = vmatprep.subr.mxu0 0.0
    %176 = vmatpush1.msra.mxu0 0.0
    %177 = vmatprep.subr.mxu0 0.0
    %178 = vmatpush1.msra.mxu0 0.0
    %179 = vmatprep.subr.mxu0 0.0
    %180 = vmatpush1.msra.mxu0 0.0
    %181 = vmatprep.subr.mxu0 0.0
    %182 = vmatpush1.msra.mxu0 0.0
    %183 = vmatprep.subr.mxu0 0.0
    %184 = vmatpush1.msra.mxu0 0.0
    %185 = vmatprep.subr.mxu0 0.0
    %186 = vmatpush1.msra.mxu0 0.0
    %187 = vmatprep.subr.mxu0 0.0
    %188 = vmatpush1.msra.mxu0 0.0
    %189 = vmatprep.subr.mxu0 0.0
    %190 = vmatpush1.msra.mxu0 0.0
    %191 = vmatprep.subr.mxu0 0.0
    %192 = vmatpush1.msra.mxu0 0.0
    %193 = vmatprep.subr.mxu0 0.0
    %194 = vmatpush1.msra.mxu0 0.0
    %195 = vmatprep.mubr.f32.mxu0 0.0
    %196 = vmatmul.mubr.f32.gmra.mrb[0].mxu0 %v126
    %v197 = vpop.f32.mrb[0].mxu0
    %v198 = vadd.f32 %v114, %v197
    %v199 = vpop.f32.mrb[0].mxu0
    %v200 = vadd.f32 %v116, %v199
    %201 = vmatprep.mubr.f32.mxu0 0.0
    %202 = vmatmul.mubr.f32.gmra.mrb[0].mxu0 %v129
    %v203 = vpop.f32.mrb[0].mxu0
    %v204 = vadd.f32 %v120, %v203
    %v205 = vpop.f32.mrb[0].mxu0
    %v206 = vadd.f32 %v122, %v205
    %207 = vdwg.mxu0
    %209 = vset.pattern.permute.xlu0 0
    %210 = vperm.xlu0 %209, %v28
    %v211 = vpop.permute.xlu0 %210
    %214 = vset.pattern.permute.xlu0 0
    %215 = vperm.xlu0 %214, %v29
    %v216 = vpop.permute.xlu0 %215
    %v218 = vadd.f32 %v198, %v211
    %v219 = vadd.f32 %v200, %v211
    %v220 = vadd.f32 %v204, %v216
    %v221 = vadd.f32 %v206, %v216
    %v222 = vadd.f32 %v30, %v220
    %v223 = vadd.f32 %v31, %v221
    %v224 = vmul.f32 %v218, 1.442695
    %v225 = vpow.pop %v224
    %v226 = vmul.f32 %v219, 1.442695
    %v227 = vpow.pop %v226
    %v228 = vmul.f32 %v222, %v225
    %v229 = vmul.f32 %v223, %v227
    %230 = vst [vmem:[#allocation2] sm:$0xff] %v228
    %231 = vst [vmem:[#allocation2 + $0x8] sm:$0xff] %v229
    %v232 = vadd.f32 %v218, %v219
    %233 = vadd.xlane.f32.xlu0 %v232
    %v234 = vpop.xlane.xlu0 %233
    %v235 = vrot.slane %v234, 4
    %v236 = vadd.f32 %v234, %v235
    %v237 = vrot.slane %v236, 2
    %v238 = vadd.f32 %v236, %v237
    %v239 = vrot.slane %v238, 1
    %v240 = vadd.f32 %v238, %v239
    %s241 = vtos %v240
    %s242 = scalar_lea.smem [#allocation5], 0
    %243 = sst [smem:[%s242]] %s241
    %s244 = scalar_lea.vmem %s0, 16
    %v245 = vld [vmem:[%s244] sm:$0xff]
    %v246 = vld [vmem:[%s244 + $0x8] sm:$0xff]
    %s247 = scalar_lea.vmem %s1, 8
    %v248 = vld [vmem:[%s247] sm:$0xff]
    %v250 = vcombine.high %v248, %v248
    %v251 = vsel %vm42, %v248, 0
    %v253 = vsel %vm42, %v250, 0
    %255 = vmatprep.subr.mxu0 %v253
    %256 = vmatpush1.msra.mxu0 %v251
    %257 = vmatprep.subr.mxu0 0.0
    %258 = vmatpush1.msra.mxu0 0.0
    %259 = vmatprep.subr.mxu0 0.0
    %260 = vmatpush1.msra.mxu0 0.0
    %261 = vmatprep.subr.mxu0 0.0
    %262 = vmatpush1.msra.mxu0 0.0
    %263 = vmatprep.subr.mxu0 0.0
    %264 = vmatpush1.msra.mxu0 0.0
    %265 = vmatprep.subr.mxu0 0.0
    %266 = vmatpush1.msra.mxu0 0.0
    %267 = vmatprep.subr.mxu0 0.0
    %268 = vmatpush1.msra.mxu0 0.0
    %269 = vmatprep.subr.mxu0 0.0
    %270 = vmatpush1.msra.mxu0 0.0
    %271 = vmatprep.subr.mxu0 0.0
    %272 = vmatpush1.msra.mxu0 0.0
    %273 = vmatprep.subr.mxu0 0.0
    %274 = vmatpush1.msra.mxu0 0.0
    %275 = vmatprep.subr.mxu0 0.0
    %276 = vmatpush1.msra.mxu0 0.0
    %277 = vmatprep.subr.mxu0 0.0
    %278 = vmatpush1.msra.mxu0 0.0
    %279 = vmatprep.subr.mxu0 0.0
    %280 = vmatpush1.msra.mxu0 0.0
    %281 = vmatprep.subr.mxu0 0.0
    %282 = vmatpush1.msra.mxu0 0.0
    %283 = vmatprep.subr.mxu0 0.0
    %284 = vmatpush1.msra.mxu0 0.0
    %285 = vmatprep.subr.mxu0 0.0
    %286 = vmatpush1.msra.mxu0 0.0
    %287 = vmatprep.subr.mxu0 0.0
    %288 = vmatpush1.msra.mxu0 0.0
    %289 = vmatprep.subr.mxu0 0.0
    %290 = vmatpush1.msra.mxu0 0.0
    %291 = vmatprep.subr.mxu0 0.0
    %292 = vmatpush1.msra.mxu0 0.0
    %293 = vmatprep.subr.mxu0 0.0
    %294 = vmatpush1.msra.mxu0 0.0
    %295 = vmatprep.subr.mxu0 0.0
    %296 = vmatpush1.msra.mxu0 0.0
    %297 = vmatprep.subr.mxu0 0.0
    %298 = vmatpush1.msra.mxu0 0.0
    %299 = vmatprep.subr.mxu0 0.0
    %300 = vmatpush1.msra.mxu0 0.0
    %301 = vmatprep.subr.mxu0 0.0
    %302 = vmatpush1.msra.mxu0 0.0
    %303 = vmatprep.subr.mxu0 0.0
    %304 = vmatpush1.msra.mxu0 0.0
    %305 = vmatprep.subr.mxu0 0.0
    %306 = vmatpush1.msra.mxu0 0.0
    %307 = vmatprep.subr.mxu0 0.0
    %308 = vmatpush1.msra.mxu0 0.0
    %309 = vmatprep.subr.mxu0 0.0
    %310 = vmatpush1.msra.mxu0 0.0
    %311 = vmatprep.subr.mxu0 0.0
    %312 = vmatpush1.msra.mxu0 0.0
    %313 = vmatprep.subr.mxu0 0.0
    %314 = vmatpush1.msra.mxu0 0.0
    %315 = vmatprep.subr.mxu0 0.0
    %316 = vmatpush1.msra.mxu0 0.0
    %317 = vmatprep.subr.mxu0 0.0
    %318 = vmatpush1.msra.mxu0 0.0
    %319 = vmatprep.mubr.f32.mxu0 0.0
    %320 = vmatmul.mubr.f32.gmra.mrb[0].mxu0 %v37
    %v321 = vpop.f32.mrb[0].mxu0
    %v322 = vadd.f32 0.0, %v321
    %v323 = vpop.f32.mrb[0].mxu0
    %v324 = vadd.f32 0.0, %v323
    %325 = vmatprep.mubr.f32.mxu0 0.0
    %326 = vmatmul.mubr.f32.gmra.mrb[0].mxu0 %v40
    %v327 = vpop.f32.mrb[0].mxu0
    %v328 = vadd.f32 0.0, %v327
    %v329 = vpop.f32.mrb[0].mxu0
    %v330 = vadd.f32 0.0, %v329
    %331 = vdwg.mxu0
    %332 = vmatprep.subr.mxu0 %v246
    %333 = vmatpush1.msra.mxu0 %v245
    %334 = vmatprep.subr.mxu0 0.0
    %335 = vmatpush1.msra.mxu0 0.0
    %336 = vmatprep.subr.mxu0 0.0
    %337 = vmatpush1.msra.mxu0 0.0
    %338 = vmatprep.subr.mxu0 0.0
    %339 = vmatpush1.msra.mxu0 0.0
    %340 = vmatprep.subr.mxu0 0.0
    %341 = vmatpush1.msra.mxu0 0.0
    %342 = vmatprep.subr.mxu0 0.0
    %343 = vmatpush1.msra.mxu0 0.0
    %344 = vmatprep.subr.mxu0 0.0
    %345 = vmatpush1.msra.mxu0 0.0
    %346 = vmatprep.subr.mxu0 0.0
    %347 = vmatpush1.msra.mxu0 0.0
    %348 = vmatprep.subr.mxu0 0.0
    %349 = vmatpush1.msra.mxu0 0.0
    %350 = vmatprep.subr.mxu0 0.0
    %351 = vmatpush1.msra.mxu0 0.0
    %352 = vmatprep.subr.mxu0 0.0
    %353 = vmatpush1.msra.mxu0 0.0
    %354 = vmatprep.subr.mxu0 0.0
    %355 = vmatpush1.msra.mxu0 0.0
    %356 = vmatprep.subr.mxu0 0.0
    %357 = vmatpush1.msra.mxu0 0.0
    %358 = vmatprep.subr.mxu0 0.0
    %359 = vmatpush1.msra.mxu0 0.0
    %360 = vmatprep.subr.mxu0 0.0
    %361 = vmatpush1.msra.mxu0 0.0
    %362 = vmatprep.subr.mxu0 0.0
    %363 = vmatpush1.msra.mxu0 0.0
    %364 = vmatprep.subr.mxu0 0.0
    %365 = vmatpush1.msra.mxu0 0.0
    %366 = vmatprep.subr.mxu0 0.0
    %367 = vmatpush1.msra.mxu0 0.0
    %368 = vmatprep.subr.mxu0 0.0
    %369 = vmatpush1.msra.mxu0 0.0
    %370 = vmatprep.subr.mxu0 0.0
    %371 = vmatpush1.msra.mxu0 0.0
    %372 = vmatprep.subr.mxu0 0.0
    %373 = vmatpush1.msra.mxu0 0.0
    %374 = vmatprep.subr.mxu0 0.0
    %375 = vmatpush1.msra.mxu0 0.0
    %376 = vmatprep.subr.mxu0 0.0
    %377 = vmatpush1.msra.mxu0 0.0
    %378 = vmatprep.subr.mxu0 0.0
    %379 = vmatpush1.msra.mxu0 0.0
    %380 = vmatprep.subr.mxu0 0.0
    %381 = vmatpush1.msra.mxu0 0.0
    %382 = vmatprep.subr.mxu0 0.0
    %383 = vmatpush1.msra.mxu0 0.0
    %384 = vmatprep.subr.mxu0 0.0
    %385 = vmatpush1.msra.mxu0 0.0
    %386 = vmatprep.subr.mxu0 0.0
    %387 = vmatpush1.msra.mxu0 0.0
    %388 = vmatprep.subr.mxu0 0.0
    %389 = vmatpush1.msra.mxu0 0.0
    %390 = vmatprep.subr.mxu0 0.0
    %391 = vmatpush1.msra.mxu0 0.0
    %392 = vmatprep.subr.mxu0 0.0
    %393 = vmatpush1.msra.mxu0 0.0
    %394 = vmatprep.subr.mxu0 0.0
    %395 = vmatpush1.msra.mxu0 0.0
    %396 = vmatprep.mubr.f32.mxu0 0.0
    %397 = vmatmul.mubr.f32.gmra.mrb[0].mxu0 %v126
    %v398 = vpop.f32.mrb[0].mxu0
    %v399 = vadd.f32 %v322, %v398
    %v400 = vpop.f32.mrb[0].mxu0
    %v401 = vadd.f32 %v324, %v400
    %402 = vmatprep.mubr.f32.mxu0 0.0
    %403 = vmatmul.mubr.f32.gmra.mrb[0].mxu0 %v129
    %v404 = vpop.f32.mrb[0].mxu0
    %v405 = vadd.f32 %v328, %v404
    %v406 = vpop.f32.mrb[0].mxu0
    %v407 = vadd.f32 %v330, %v406
    %408 = vdwg.mxu0
    %v409 = vadd.f32 %v399, %v211
    %v410 = vadd.f32 %v401, %v211
    %v411 = vadd.f32 %v405, %v216
    %v412 = vadd.f32 %v407, %v216
    %v413 = vadd.f32 %v245, %v411
    %v414 = vadd.f32 %v246, %v412
    %v415 = vmul.f32 %v409, 1.442695
    %v416 = vpow.pop %v415
    %v417 = vmul.f32 %v410, 1.442695
    %v418 = vpow.pop %v417
    %v419 = vmul.f32 %v413, %v416
    %v420 = vmul.f32 %v414, %v418
    %s421 = scalar_lea.vmem [#allocation2], 16
    %422 = vst [vmem:[%s421] sm:$0xff] %v419
    %423 = vst [vmem:[%s421 + $0x8] sm:$0xff] %v420
    %v424 = vadd.f32 %v409, %v410
    %425 = vadd.xlane.f32.xlu0 %v424
    %v426 = vpop.xlane.xlu0 %425
    %v427 = vrot.slane %v426, 4
    %v428 = vadd.f32 %v426, %v427
    %v429 = vrot.slane %v428, 2
    %v430 = vadd.f32 %v428, %v429
    %v431 = vrot.slane %v430, 1
    %v432 = vadd.f32 %v430, %v431
    %s433 = vtos %v432
    %s434 = scalar_lea.smem [#allocation5], 128
    %435 = sst [smem:[%s434]] %s433
    // Predicated region
    $region22: #{tpu_custom_call.1} parent=1 // pred_check
      _
    $region23: #{tpu_custom_call.1} parent=1 // pred_check_branch
      %437 = sbr.rel (0) target = $region25
    $region24: #{tpu_custom_call.1} parent=1 // pred_region
      %s439 = ssub.s32 512, 512
      %440 = vsyncadd [#allocation3], %s439
      %s441 = sshll.u32 [#allocation2], 4
      %s442 = int_to_ptr.vmem [resolvable:$true] %s441
      %447 = dma.vmem_to_hbm [thread:$0]  %s442, 512, %s5, [#allocation3], 256, 256, 16
    $region25: #{tpu_custom_call.1} parent=1 // pred_fallthru
      _
    // Predicated region
    $region26: #{tpu_custom_call.1} parent=1 // pred_check
      _
    $region27: #{tpu_custom_call.1} parent=1 // pred_check_branch
      %449 = sbr.rel (0) target = $region29
    $region28: #{tpu_custom_call.1} parent=1 // pred_region
      %s451 = ssub.s32 32, 32
      %452 = vsyncadd [#allocation4], %s451
      %s454 = sshll.u32 %s6, 4
      %s455 = int_to_ptr.vmem [resolvable:$true] %s454
      %457 = dma.smem_to_vmem [#allocation5], 32, %s455, [#allocation4]
    $region29: #{tpu_custom_call.1} parent=1 // pred_fallthru
      _
    // Predicated region
    $region30: #{tpu_custom_call.1} parent=1 // pred_check
      _
    $region31: #{tpu_custom_call.1} parent=1 // pred_check_branch
      %459 = sbr.rel (0) target = $region33
    $region32: #{tpu_custom_call.1} parent=1 // pred_region
      %460 = dma.done [#allocation3], 512
    $region33: #{tpu_custom_call.1} parent=1 // pred_fallthru
      _
    // Predicated region
    $region34: #{tpu_custom_call.1} parent=1 // pred_check
      _
    $region35: #{tpu_custom_call.1} parent=1 // pred_check_branch
      %462 = sbr.rel (0) target = $region37
    $region36: #{tpu_custom_call.1} parent=1 // pred_region
      %463 = dma.done [#allocation4], 32
    $region37: #{tpu_custom_call.1} parent=1 // pred_fallthru
      _
    %464 = sfence
    %465 = vsyncpa [#allocation3], 1
    %466 = vsyncpa [#allocation4], 1

</llo_original>
